<compile_context>
chip_gen: v6e
topology: v6e:2x2x1
jax: 0.10.0
libtpu: 0.0.40
codegen_flags: <defaults>
</compile_context>

<pallas_src>
import functools

import numpy as np
import jax
import jax.numpy as jnp
from jax.experimental import pallas as pl
from jax.experimental.pallas import tpu as pltpu

OMEGA = 30.0


def _siren_kernel(x_ref, o_ref, *, omega):
    # Widen to f32 for the transcendental, compute sin(omega * x), cast back.
    x = x_ref[...].astype(jnp.float32)
    o_ref[...] = jnp.sin(omega * x).astype(o_ref.dtype)


def _round_up(v, q):
    return ((v + q - 1) // q) * q


def siren_activation(x, *, omega=OMEGA, max_block_rows_512=2048, donate=False):
    """Apply sin(omega * x) elementwise with a Pallas TPU kernel.

    Works for any input shape/size. `donate=True` adds input/output aliasing
    (only safe to want when the caller donates `x`, e.g. under jit donation).
    """
    orig_shape = x.shape
    orig_dtype = x.dtype
    total = x.size
    if total == 0:
        return x

    itemsize = jnp.dtype(orig_dtype).itemsize
    # Dtype-aware sublane quantum: 8 for 4-byte, 16 for 2-byte, 32 for 1-byte.
    sublane = max(8, 32 // itemsize)

    # Lane-dense layout: pick the widest cols in {512, 256, 128} that divides
    # the element count so no pad / output-slice pass is needed at all.
    cols = None
    for c in (512, 256, 128):
        if total % c == 0:
            cols = c
            break
    needs_pad = cols is None
    if needs_pad:
        cols = 512

    rows = pl.cdiv(total, cols)

    flat = x.reshape(-1)
    if needs_pad:
        # Small pad (< cols elements) only when no lane-multiple divides total.
        flat = jnp.pad(flat, (0, rows * cols - total))
    x2d = flat.reshape(rows, cols)

    # Row tile: ~4 MiB f32 blocks regardless of cols (scale the row cap), and
    # at least 2 grid steps when rows allows it so v7x's two TCs both work.
    row_cap = max_block_rows_512 * (512 // cols)
    tile_rows = max(sublane, min(row_cap, _round_up(pl.cdiv(rows, 2), sublane)))
    if tile_rows >= rows:
        tile_rows = rows  # single block spanning the full row extent (always legal)

    # Uneven last block is masked by Pallas: no row padding, no output slice.
    grid = (pl.cdiv(rows, tile_rows),)
    blk = pl.BlockSpec((tile_rows, cols), lambda i: (i, 0))

    cost = pl.CostEstimate(
        flops=total,                      # one multiply per element
        transcendentals=total,            # one sin per element
        bytes_accessed=2 * total * itemsize,
    )

    extra_kwargs = {}
    if donate and not needs_pad:
        # Same shape/dtype in and out; lets XLA reuse the input buffer when it
        # is actually donated by the caller.
        extra_kwargs["input_output_aliases"] = {0: 0}

    out2d = pl.pallas_call(
        functools.partial(_siren_kernel, omega=float(omega)),
        out_shape=jax.ShapeDtypeStruct((rows, cols), orig_dtype),
        grid_spec=pltpu.PrefetchScalarGridSpec(
            num_scalar_prefetch=0,
            grid=grid,
            in_specs=[blk],
            out_specs=blk,
        ),
        compiler_params=pltpu.CompilerParams(
            dimension_semantics=("parallel",),
            # 16 MiB double-buffered worst case (+headroom); raises v5e's
            # 16 MiB default scoped limit, safe on v6e/v7x.
            vmem_limit_bytes=32 * 1024 * 1024,
            # Let XLA fuse the (tiny) pad/reshape producer into the input
            # pipeline instead of materializing a padded HBM copy.
            allow_input_fusion=[True] if needs_pad else None,
        ),
        cost_estimate=cost,
        **extra_kwargs,
    )(x2d)

    out_flat = out2d.reshape(-1)
    if needs_pad:
        out_flat = out_flat[:total]
    return out_flat.reshape(orig_shape)


if __name__ == "__main__":
    key = jax.random.PRNGKey(0)
    k1, k2, k3 = jax.random.split(key, 3)

    # Case 1: decoder-style activations (batch=2, seq=8, hidden=32).
    # total=512 -> cols=512 divides it: zero-pad-free, zero-slice path.
    x1 = jax.random.normal(k1, (2, 8, 32), jnp.float32)
    out1 = jax.block_until_ready(siren_activation(x1))
    assert out1.shape == x1.shape and out1.dtype == x1.dtype
    ref1 = np.sin(OMEGA * np.asarray(x1, dtype=np.float64))
    np.testing.assert_allclose(np.asarray(out1, np.float64), ref1, rtol=0, atol=2e-4)

    # Case 2: ragged size (total=1155, no 128-multiple divisor) -> small-pad path.
    x2 = jax.random.normal(k2, (3, 5, 77), jnp.float32)
    out2 = jax.block_until_ready(siren_activation(x2))
    assert out2.shape == x2.shape and out2.dtype == x2.dtype
    ref2 = np.sin(OMEGA * np.asarray(x2, dtype=np.float64))
    np.testing.assert_allclose(np.asarray(out2, np.float64), ref2, rtol=0, atol=2e-4)

    # Case 3: rows not a multiple of tile_rows -> exercises the masked uneven
    # last block + 2-step parallel grid (rows=10, tile_rows=8, grid=(2,)).
    x3 = jax.random.normal(k3, (10, 512), jnp.float32)
    out3 = jax.block_until_ready(siren_activation(x3))
    assert out3.shape == x3.shape and out3.dtype == x3.dtype
    ref3 = np.sin(OMEGA * np.asarray(x3, dtype=np.float64))
    np.testing.assert_allclose(np.asarray(out3, np.float64), ref3, rtol=0, atol=2e-4)

    print("KERNEL_OK")
</pallas_src>

<mosaic_0001>
module attributes {stable_mosaic.version = 11 : i64} {
  func.func @_siren_kernel(%arg0: i32, %arg1: memref<1x512xf32, #tpu.memory_space<vmem>>, %arg2: memref<1x512xf32, #tpu.memory_space<vmem>>) attributes {dimension_semantics = [#tpu.dimension_semantics<parallel>], iteration_bounds = array<i64: 1>, scalar_prefetch = 0 : i64, scratch_operands = 0 : i64, tpu.core_type = #tpu.core_type<tc>, window_params = [{transform_indices = @transform_0, window_bounds = array<i64: 1, 512>}, {transform_indices = @transform_1, window_bounds = array<i64: 1, 512>}]} {
    %c0 = arith.constant 0 : index
    %c0_0 = arith.constant 0 : index
    %0 = vector.load %arg1[%c0, %c0_0] : memref<1x512xf32, #tpu.memory_space<vmem>>, vector<1x512xf32>
    %cst = arith.constant 3.000000e+01 : f32
    %1 = vector.broadcast %cst : f32 to vector<1x512xf32>
    %2 = arith.mulf %1, %0 : vector<1x512xf32>
    %3 = math.sin %2 : vector<1x512xf32>
    %c0_1 = arith.constant 0 : index
    %c0_2 = arith.constant 0 : index
    %4 = vector.load %arg2[%c0_1, %c0_2] : memref<1x512xf32, #tpu.memory_space<vmem>>, vector<1x512xf32>
    tpu.vector_store %arg2[%c0_1, %c0_2], %3 {strides = array<i32>} : memref<1x512xf32, #tpu.memory_space<vmem>>, vector<1x512xf32>,
    return
  }
  func.func @transform_0(%arg0: i32) -> (i32, i32) {
    %c0_i32 = arith.constant 0 : i32
    %c0_i32_0 = arith.constant 0 : i32
    return %arg0, %c0_i32 : i32, i32
  }
  func.func @transform_1(%arg0: i32) -> (i32, i32) {
    %c0_i32 = arith.constant 0 : i32
    %c0_i32_0 = arith.constant 0 : i32
    return %arg0, %c0_i32 : i32, i32
  }
}

</mosaic_0001>

<llo_original>
// kernel: tpu_custom_call.1
$region0: #{tpu_custom_call.1}
  #allocation0 [shape = 'u32[]', space=smem, size = 0x4, offset = 0x4, fixed_abs, tag = 'smem constant byte address 0x4 - core index']
  #allocation1 [shape = 'u32[144,128]{1,0:T(1,128)}', space=vmem, size = 0x12000, scoped, tag = 'internal scratch']
  %s0 = inlined_call_operand.hbm [shape: f32[1,512], index: 0, kind: input, shape index: {}]
  %s1 = inlined_call_operand.hbm [shape: f32[1,512], index: 1, kind: output, shape index: {}]
  %s2 = sld [smem:[#allocation0]]
  $region18: #{tpu_custom_call.1} parent=0
    _
  %s4 = ssub.s32 1, %s2
  %s5 = scalar_select 0, %s4, %s2
  $region1: #{tpu_custom_call.1} parent=0
    #allocation2 [shape = 'u8[2048]{0}', space=vmem, size = 0x800, scoped, tag = 'input window, operand 0, single buffered']
    #allocation3 [shape = 's32[1]{0}', space=sflag, size = 0x4, scoped, tag = 'scoped memory for tpu_custom_call.1']
    #allocation4 [shape = 's32[1]{0}', space=sflag, size = 0x4, scoped, tag = 'scoped memory for tpu_custom_call.1']
    #allocation5 [shape = 'u8[2048]{0}', space=vmem, size = 0x800, scoped, tag = 'output window, operand 0, single buffered']
    %6 = vsyncpa [#allocation3], 0
    %7 = vsyncpa [#allocation4], 0
    // Predicated region
    $region2: #{tpu_custom_call.1} parent=1 // pred_check
      _
    $region3: #{tpu_custom_call.1} parent=1 // pred_check_branch
      %9 = sbr.rel (0) target = $region5
    $region4: #{tpu_custom_call.1} parent=1 // pred_region
      %s11 = ssub.s32 64, 64
      %12 = vsyncadd [#allocation3], %s11
      %s14 = sshll.u32 [#allocation2], 4
      %s15 = int_to_ptr.vmem [resolvable:$true] %s14
      %17 = dma.hbm_to_vmem [thread:$0]  %s0, 64, %s15, [#allocation3]
    $region5: #{tpu_custom_call.1} parent=1 // pred_fallthru
      _
    // Predicated region
    $region6: #{tpu_custom_call.1} parent=1 // pred_check
      _
    $region7: #{tpu_custom_call.1} parent=1 // pred_check_branch
      %19 = sbr.rel (0) target = $region9
    $region8: #{tpu_custom_call.1} parent=1 // pred_region
      %20 = dma.done [#allocation3], 64
    $region9: #{tpu_custom_call.1} parent=1 // pred_fallthru
      _
    %v21 = vld [vmem:[#allocation2] sm:$0xf]
    %v22 = vmul.f32 %v21, 30.0
    %v23 = vand.u32 2147483647, %v22
    %vm24 = vcmp.le.f32.partialorder %v23, 0.7853982
    %vm25 = vcmp.lt.s32.totalorder %v22, 0
    %v26 = vand.u32 %v22, 2139095040
    %v27 = vshrl.u32 %v26, 23
    %v28 = vsub.s32 %v27, 127
    %v29 = vand.u32 2147483647, %v22
    %v30 = vand.u32 %v29, 8388607
    %v31 = vor.u32 %v30, 8388608
    %v32 = vsub.s32 0, %v31
    %v33 = vadd.s32 %v28, 1
    %vm34 = vcmp.gt.s32.totalorder %v33, 0
    %v35 = vsel %vm34, %v33, 0
    %v36 = vshrl.u32 %v35, 5
    %v37 = vand.u32 %v35, 31
    %v38 = vsub.s32 32, %v37
    %v39 = vshrl.u32 683565275, %v38
    %v40 = vshll.u32 683565275, %v37
    %v41 = vshrl.u32 2475754826, %v38
    %v42 = vor.u32 %v40, %v41
    %v43 = vshll.u32 2475754826, %v37
    %v44 = vshrl.u32 2131351028, %v38
    %v45 = vor.u32 %v43, %v44
    %v46 = vshll.u32 2131351028, %v37
    %v47 = vshrl.u32 2102212464, %v38
    %v48 = vor.u32 %v46, %v47
    %v49 = vshll.u32 2102212464, %v37
    %v50 = vshrl.u32 920167782, %v38
    %v51 = vor.u32 %v49, %v50
    %v52 = vshll.u32 920167782, %v37
    %v53 = vshrl.u32 1326507024, %v38
    %v54 = vor.u32 %v52, %v53
    %vm55 = vcmp.lt.s32.totalorder %v36, 1
    %vm56 = vcmp.lt.s32.totalorder %v36, 2
    %vm57 = vcmp.lt.s32.totalorder %v36, 3
    %vm58 = vcmp.lt.s32.totalorder %v36, 4
    %v59 = vsel %vm55, %v39, %v42
    %v60 = vsel %vm58, %v48, 2102212464
    %v61 = vsel %vm57, %v45, %v60
    %v62 = vsel %vm56, %v59, %v61
    %v63 = vsel %vm55, %v42, %v45
    %v64 = vsel %vm58, %v51, 920167782
    %v65 = vsel %vm57, %v48, %v64
    %v66 = vsel %vm56, %v63, %v65
    %v67 = vsel %vm55, %v45, %v48
    %v68 = vsel %vm58, %v54, 1326507024
    %v69 = vsel %vm57, %v51, %v68
    %v70 = vsel %vm56, %v67, %v69
    %v71 = vshll.u32 %v31, 8
    %v72 = vmul.u32.u64.compose %v71, %v70
    %v73 = vextract.low.u32 %v72
    %v74 = vextract.high.u32 %v72
    %v75 = vmul.u32.u64.compose %v71, %v66
    %v76 = vextract.low.u32 %v75
    %v77 = vextract.high.u32 %v75
    %v78 = vmul.u32 %v71, %v62
    %v79 = vadd.s32 %v74, %v76
    %vm80 = vc.u32 %v74, %v76
    %v81 = vadd.s32 %v77, 1
    %v82 = vsel %vm80, %v81, %v77
    %v83 = vadd.s32 %v78, %v82
    %v84 = vadd.s32 %v83, 536870912
    %v85 = vshrl.u32 %v84, 30
    %v86 = vshll.u32 %v85, 30
    %v87 = vsub.s32 %v83, %v86
    %vm88 = vcmp.lt.s32.totalorder %v87, 0
    %v89 = vsub.s32 0, %v87
    %v90 = vsel %vm88, %v89, %v87
    %v91 = vclz %v90
    %v92 = vsub.s32 %v91, 2
    %vm93 = vcmp.gt.s32.totalorder 0, %v92
    %v94 = vsel %vm93, 0, %v92
    %v95 = vsub.s32 32, %v94
    %v96 = vshll.u32 %v87, %v94
    %v97 = vshrl.u32 %v79, %v95
    %v98 = vor.u32 %v96, %v97
    %v99 = vsub.s32 4294967266, %v94
    %v100 = vadd.s32 %v99, 127
    %v101 = vshll.u32 %v100, 23
    %v102 = vor.u32 4788187, %v101
    %v103 = vand.u32 2147483647, %v102
    %v105 = vcvt.s32.f32 %v98
    %v106 = vmul.f32 %v105, %v103
    %v107 = vxor.u32 %v106, 2147483648
    %v108 = vsel %vm25, %v107, %v106
    %v109 = vsub.s32 4, %v85
    %v110 = vsel %vm25, %v109, %v85
    %v111 = vsel %vm24, %v22, %v108
    %v112 = vsel %vm24, 0, %v110
    %v113 = vcosq.f32.pop %v111
    %v114 = vsinq.f32.pop %v111
    %vm115 = vweird.f32 %v22
    %v116 = vadd.s32 %v112, 3
    %v117 = vand.u32 %v116, 3
    %vm118 = vcmp.lt.s32.totalorder %v117, 2
    %vm119 = vcmp.eq.s32.totalorder %v117, 0
    %v120 = vxor.u32 %v114, 2147483648
    %v121 = vsel %vm119, %v113, %v120
    %vm122 = vcmp.eq.s32.totalorder %v117, 2
    %v123 = vxor.u32 %v113, 2147483648
    %v124 = vsel %vm122, %v123, %v114
    %v125 = vsel %vm118, %v121, %v124
    %v126 = vsel %vm115, nan, %v125
    %v127 = vlaneseq
    %vm128 = vcmp.ge.s32.totalorder %v127, 0
    %vm129 = vcmp.lt.s32.totalorder %v127, 512
    %vm130 = vmand %vm128, %vm129
    %131 = vst.msk [vmem:[#allocation5] sm:$0xf] %vm130, %v126
    // Predicated region
    $region10: #{tpu_custom_call.1} parent=1 // pred_check
      _
    $region11: #{tpu_custom_call.1} parent=1 // pred_check_branch
      %133 = sbr.rel (0) target = $region13
    $region12: #{tpu_custom_call.1} parent=1 // pred_region
      %s135 = ssub.s32 64, 64
      %136 = vsyncadd [#allocation4], %s135
      %s138 = sshll.u32 [#allocation5], 4
      %s139 = int_to_ptr.vmem [resolvable:$true] %s138
      %141 = dma.vmem_to_hbm [thread:$0]  %s139, 64, %s1, [#allocation4]
    $region13: #{tpu_custom_call.1} parent=1 // pred_fallthru
      _
    // Predicated region
    $region14: #{tpu_custom_call.1} parent=1 // pred_check
      _
    $region15: #{tpu_custom_call.1} parent=1 // pred_check_branch
      %143 = sbr.rel (0) target = $region17
    $region16: #{tpu_custom_call.1} parent=1 // pred_region
      %144 = dma.done [#allocation4], 64
    $region17: #{tpu_custom_call.1} parent=1 // pred_fallthru
      _
    %145 = vsyncpa [#allocation3], 1
    %146 = vsyncpa [#allocation4], 1

</llo_original>
